<compile_context>
chip_gen: v6e
topology: v6e:2x2x1
jax: 0.10.0
libtpu: 0.0.40
codegen_flags: <defaults>
</compile_context>

<pallas_src>
import functools

import jax
import jax.numpy as jnp
from jax.experimental import pallas as pl
from jax.experimental.pallas import tpu as pltpu

_NEG_BIG = -1.0e30  # bias for padded classes -> exp() underflows to exactly 0


def _logreg_kernel(x_ref, w_ref, b_ref, o_ref):
    # x_ref: (BN, F)   input rows
    # w_ref: (Cp, F)   Linear weight, class dim padded to a multiple of 128
    # b_ref: (1, Cp)   bias (padded entries = -1e30)
    # o_ref: (BN, Cp)  softmax probabilities (padded classes -> 0)
    logits = jax.lax.dot_general(
        x_ref[...], w_ref[...],
        dimension_numbers=(((1,), (1,)), ((), ())),   # contract F with F (x @ W^T)
        preferred_element_type=jnp.float32)
    logits = logits + b_ref[...]
    # numerically stable softmax over the class axis (PyTorch dim=1)
    m = jnp.max(logits, axis=-1, keepdims=True)
    e = jnp.exp(logits - m)
    denom = jnp.sum(e, axis=-1, keepdims=True)
    inv = pl.reciprocal(denom, approx=True)           # EUP slot (otherwise idle)
    inv = inv * (2.0 - denom * inv)                   # one Newton step -> f32 accuracy
    o_ref[...] = (e * inv).astype(o_ref.dtype)


def _round_up(x, m):
    return ((x + m - 1) // m) * m


@functools.partial(jax.jit, static_argnames=("block_n",))
def logreg_forward(seq, weight, bias, block_n=None):
    """Pallas equivalent of LogReg.forward(multilabel, seq).

    seq:    (N, ft_in) float32
    weight: (nb_classes, ft_in) float32 (PyTorch nn.Linear layout, NOT transposed)
    bias:   (nb_classes,) float32
    returns (N, nb_classes) float32 softmax probabilities
    """
    n, ft_in = seq.shape
    nb_classes = weight.shape[0]
    c_pad = _round_up(max(nb_classes, 128), 128)

    # Pad the class dim so output stores are lane-dense (multiple of 128 lanes).
    # Padded classes get weight rows of 0 and bias of -1e30 -> softmax prob 0.
    w_pad = jnp.zeros((c_pad, ft_in), dtype=seq.dtype).at[:nb_classes].set(weight)
    b_pad = jnp.full((1, c_pad), _NEG_BIG, dtype=seq.dtype).at[0, :nb_classes].set(bias)

    if block_n is None:
        budget = 24 * 1024 * 1024                     # tile budget, fits v7x scoped VMEM
        fixed = 2 * 4 * (c_pad * ft_in + c_pad)       # resident (double-buffered) W + b
        per_row = 2 * 4 * (ft_in + c_pad)             # double-buffered x-row + out-row
        cap = max(128, (budget - fixed) // per_row)
        block_n = max(128, (int(min(2048, cap)) // 128) * 128)
        if n > 256:                                   # >=2 grid steps -> both v7x TCs busy
            block_n = min(block_n, _round_up((n + 1) // 2, 128))
    if block_n >= n:
        block_n = n                                   # single full-extent tile (always legal)

    grid = (pl.cdiv(n, block_n),)
    cost = pl.CostEstimate(
        flops=2 * n * ft_in * c_pad,
        transcendentals=n * c_pad,
        bytes_accessed=4 * (n * ft_in + c_pad * ft_in + n * c_pad))

    out_padded = pl.pallas_call(
        _logreg_kernel,
        out_shape=jax.ShapeDtypeStruct((n, c_pad), seq.dtype),
        grid_spec=pltpu.PrefetchScalarGridSpec(
            num_scalar_prefetch=0,
            grid=grid,
            in_specs=[
                pl.BlockSpec((block_n, ft_in), lambda i: (i, 0)),
                pl.BlockSpec((c_pad, ft_in), lambda i: (0, 0)),
                pl.BlockSpec((1, c_pad), lambda i: (0, 0)),
            ],
            out_specs=pl.BlockSpec((block_n, c_pad), lambda i: (i, 0)),
        ),
        compiler_params=pltpu.CompilerParams(
            dimension_semantics=("parallel",),
            vmem_limit_bytes=32 * 1024 * 1024),
        cost_estimate=cost,
    )(seq, w_pad, b_pad)

    return out_padded[:, :nb_classes]


def init_logreg_params(key, ft_in, nb_classes):
    """Deterministic params matching LogReg.__init__:
    xavier_uniform_ on weight, zeros on bias."""
    bound = (6.0 / (ft_in + nb_classes)) ** 0.5
    weight = jax.random.uniform(
        key, (nb_classes, ft_in), minval=-bound, maxval=bound, dtype=jnp.float32)
    bias = jnp.zeros((nb_classes,), dtype=jnp.float32)
    return weight, bias


if __name__ == "__main__":
    key = jax.random.PRNGKey(0)
    k_w, k_x, k_w2, k_x2 = jax.random.split(key, 4)

    # --- small demo matching the module (multilabel flag is unused by forward) ---
    N, FT_IN, NB_CLASSES = 8, 32, 8
    weight, bias = init_logreg_params(k_w, FT_IN, NB_CLASSES)
    seq = jax.random.normal(k_x, (N, FT_IN), dtype=jnp.float32)
    multilabel = False  # kept for signature parity; unused in forward

    out = logreg_forward(seq, weight, bias)
    out = jax.block_until_ready(out)

    ref = jax.nn.softmax(seq @ weight.T + bias, axis=1)
    assert out.shape == (N, NB_CLASSES)
    assert jnp.allclose(out, ref, atol=2e-3, rtol=2e-3), "mismatch vs reference (demo)"
    assert jnp.allclose(jnp.sum(out, axis=1), 1.0, atol=1e-3)

    # --- second check: multi-step grid + partial last tile + class padding ---
    N2, FT2, C2 = 300, 256, 10
    w2, b2 = init_logreg_params(k_w2, FT2, C2)
    x2 = jax.random.normal(k_x2, (N2, FT2), dtype=jnp.float32)
    out2 = jax.block_until_ready(logreg_forward(x2, w2, b2))
    ref2 = jax.nn.softmax(x2 @ w2.T + b2, axis=1)
    assert out2.shape == (N2, C2)
    assert jnp.allclose(out2, ref2, atol=2e-3, rtol=2e-3), "mismatch vs reference (tiled)"
    assert jnp.allclose(jnp.sum(out2, axis=1), 1.0, atol=1e-3)

    print("KERNEL_OK")
</pallas_src>

<mosaic_0001>
module attributes {stable_mosaic.version = 11 : i64} {
  func.func @_logreg_kernel(%arg0: i32, %arg1: memref<8x32xf32, #tpu.memory_space<vmem>>, %arg2: memref<128x32xf32, #tpu.memory_space<vmem>>, %arg3: memref<1x128xf32, #tpu.memory_space<vmem>>, %arg4: memref<8x128xf32, #tpu.memory_space<vmem>>) attributes {dimension_semantics = [#tpu.dimension_semantics<parallel>], iteration_bounds = array<i64: 1>, scalar_prefetch = 0 : i64, scratch_operands = 0 : i64, tpu.core_type = #tpu.core_type<tc>, window_params = [{transform_indices = @transform_0, window_bounds = array<i64: 8, 32>}, {pipeline_mode = #tpu.pipeline_mode<synchronous>, transform_indices = @transform_1, window_bounds = array<i64: 128, 32>}, {pipeline_mode = #tpu.pipeline_mode<synchronous>, transform_indices = @transform_2, window_bounds = array<i64: 1, 128>}, {transform_indices = @transform_3, window_bounds = array<i64: 8, 128>}]} {
    %c0 = arith.constant 0 : index
    %c0_0 = arith.constant 0 : index
    %0 = vector.load %arg1[%c0, %c0_0] : memref<8x32xf32, #tpu.memory_space<vmem>>, vector<8x32xf32>
    %c0_1 = arith.constant 0 : index
    %c0_2 = arith.constant 0 : index
    %1 = vector.load %arg2[%c0_1, %c0_2] : memref<128x32xf32, #tpu.memory_space<vmem>>, vector<128x32xf32>
    %cst = arith.constant dense<0.000000e+00> : vector<8x128xf32>
    %2 = tpu.matmul %0, %1, %cst {dimension_numbers = #tpu.dot_dimension_numbers<[1], [1], [0], [0], [0, 0, 1, 0], [], []>} : vector<8x32xf32>, vector<128x32xf32>, vector<8x128xf32> -> vector<8x128xf32>
    %c0_3 = arith.constant 0 : index
    %c0_4 = arith.constant 0 : index
    %3 = vector.load %arg3[%c0_3, %c0_4] : memref<1x128xf32, #tpu.memory_space<vmem>>, vector<1x128xf32>
    %4 = vector.broadcast %3 : vector<1x128xf32> to vector<8x128xf32>
    %5 = arith.addf %2, %4 : vector<8x128xf32>
    %cst_5 = arith.constant dense<0xFF800000> : vector<8xf32>
    %6 = vector.multi_reduction <maximumf>, %5, %cst_5 [1] : vector<8x128xf32> to vector<8xf32>
    %7 = vector.shape_cast %6 : vector<8xf32> to vector<8x1xf32>
    %8 = vector.broadcast %7 : vector<8x1xf32> to vector<8x128xf32>
    %9 = arith.subf %5, %8 : vector<8x128xf32>
    %10 = math.exp %9 : vector<8x128xf32>
    %cst_6 = arith.constant dense<0.000000e+00> : vector<8xf32>
    %11 = vector.multi_reduction <add>, %10, %cst_6 [1] : vector<8x128xf32> to vector<8xf32>
    %12 = vector.shape_cast %11 : vector<8xf32> to vector<8x1xf32>
    %13 = tpu.reciprocal %12 {approx = true} : vector<8x1xf32> -> vector<8x1xf32>
    %14 = arith.mulf %12, %13 : vector<8x1xf32>
    %cst_7 = arith.constant 2.000000e+00 : f32
    %15 = vector.broadcast %cst_7 : f32 to vector<8x1xf32>
    %16 = arith.subf %15, %14 : vector<8x1xf32>
    %17 = arith.mulf %13, %16 : vector<8x1xf32>
    %18 = vector.broadcast %17 : vector<8x1xf32> to vector<8x128xf32>
    %19 = arith.mulf %10, %18 : vector<8x128xf32>
    %c0_8 = arith.constant 0 : index
    %c0_9 = arith.constant 0 : index
    %20 = vector.load %arg4[%c0_8, %c0_9] : memref<8x128xf32, #tpu.memory_space<vmem>>, vector<8x128xf32>
    tpu.vector_store %arg4[%c0_8, %c0_9], %19 {strides = array<i32>} : memref<8x128xf32, #tpu.memory_space<vmem>>, vector<8x128xf32>,
    return
  }
  func.func @transform_0(%arg0: i32) -> (i32, i32) {
    %c0_i32 = arith.constant 0 : i32
    %c0_i32_0 = arith.constant 0 : i32
    return %arg0, %c0_i32 : i32, i32
  }
  func.func @transform_1(%arg0: i32) -> (i32, i32) {
    %c0_i32 = arith.constant 0 : i32
    %c0_i32_0 = arith.constant 0 : i32
    %c0_i32_1 = arith.constant 0 : i32
    return %c0_i32, %c0_i32_0 : i32, i32
  }
  func.func @transform_2(%arg0: i32) -> (i32, i32) {
    %c0_i32 = arith.constant 0 : i32
    %c0_i32_0 = arith.constant 0 : i32
    %c0_i32_1 = arith.constant 0 : i32
    return %c0_i32, %c0_i32_0 : i32, i32
  }
  func.func @transform_3(%arg0: i32) -> (i32, i32) {
    %c0_i32 = arith.constant 0 : i32
    %c0_i32_0 = arith.constant 0 : i32
    return %arg0, %c0_i32 : i32, i32
  }
}

</mosaic_0001>

<llo_original>
// kernel: logreg_forward.1
$region0: #{logreg_forward.1}
  #allocation0 [shape = 'u32[]', space=smem, size = 0x4, offset = 0x4, fixed_abs, tag = 'smem constant byte address 0x4 - core index']
  #allocation1 [shape = 'u32[144,128]{1,0:T(1,128)}', space=vmem, size = 0x12000, scoped, tag = 'internal scratch']
  %s0 = inlined_call_operand.vmem [shape: f32[8,32], index: 0, kind: input, shape index: {}]
  %s1 = inlined_call_operand.vmem [shape: f32[128,32], index: 1, kind: input, shape index: {}]
  %s2 = inlined_call_operand.vmem [shape: f32[1,128], index: 2, kind: input, shape index: {}]
  %s3 = inlined_call_operand.hbm [shape: f32[8,128], index: 3, kind: output, shape index: {}]
  %s4 = sld [smem:[#allocation0]]
  $region22: #{logreg_forward.1} parent=0
    _
  %s6 = ssub.s32 1, %s4
  %s7 = scalar_select 0, %s6, %s4
  $region1: #{logreg_forward.1} parent=0
    #allocation2 [shape = 'u8[4096]{0}', space=vmem, size = 0x1000, scoped, tag = 'output window, operand 0, single buffered']
    #allocation3 [shape = 's32[1]{0}', space=sflag, size = 0x4, scoped, tag = 'scoped memory for logreg_forward.1']
    %8 = vsyncpa [#allocation3], 0
    // Predicated region
    $region2: #{logreg_forward.1} parent=1 // pred_check
      _
    $region3: #{logreg_forward.1} parent=1 // pred_check_branch
      %10 = sbr.rel (0) target = $region5
    $region4: #{logreg_forward.1} parent=1 // pred_region
      _
    $region5: #{logreg_forward.1} parent=1 // pred_fallthru
      _
    // Predicated region
    $region6: #{logreg_forward.1} parent=1 // pred_check
      _
    $region7: #{logreg_forward.1} parent=1 // pred_check_branch
      %12 = sbr.rel (0) target = $region9
    $region8: #{logreg_forward.1} parent=1 // pred_region
      _
    $region9: #{logreg_forward.1} parent=1 // pred_fallthru
      _
    // Predicated region
    $region10: #{logreg_forward.1} parent=1 // pred_check
      _
    $region11: #{logreg_forward.1} parent=1 // pred_check_branch
      %14 = sbr.rel (0) target = $region13
    $region12: #{logreg_forward.1} parent=1 // pred_region
      _
    $region13: #{logreg_forward.1} parent=1 // pred_fallthru
      _
    %v15 = vld [vmem:[%s0] sm:$0xff]
    %v16 = vld [vmem:[%s1] sm:$0xff]
    %v17 = vld [vmem:[%s1 + $0x8] sm:$0xff]
    %v18 = vld [vmem:[%s1 + $0x10] sm:$0xff]
    %v19 = vld [vmem:[%s1 + $0x18] sm:$0xff]
    %v20 = vld [vmem:[%s1 + $0x20] sm:$0xff]
    %v21 = vld [vmem:[%s1 + $0x28] sm:$0xff]
    %v22 = vld [vmem:[%s1 + $0x30] sm:$0xff]
    %v23 = vld [vmem:[%s1 + $0x38] sm:$0xff]
    %v24 = vld [vmem:[%s1 + $0x40] sm:$0xff]
    %v25 = vld [vmem:[%s1 + $0x48] sm:$0xff]
    %v26 = vld [vmem:[%s1 + $0x50] sm:$0xff]
    %v27 = vld [vmem:[%s1 + $0x58] sm:$0xff]
    %v28 = vld [vmem:[%s1 + $0x60] sm:$0xff]
    %v29 = vld [vmem:[%s1 + $0x68] sm:$0xff]
    %v30 = vld [vmem:[%s1 + $0x70] sm:$0xff]
    %v31 = vld [vmem:[%s1 + $0x78] sm:$0xff]
    %v32 = vld [vmem:[%s2] sm:$0x1]
    %v34 = vlaneseq
    %v35 = vshrl.u32 %v34, 7
    %v36 = vsub.s32 0, %v35
    %v37 = vrot.slane %v32, %v36
    %vm39 = vcmask 261120
    %v41 = vsel %vm39, %v15, 0
    %v44 = vsel %vm39, %v16, 0
    %v47 = vsel %vm39, %v17, 0
    %v50 = vsel %vm39, %v18, 0
    %v53 = vsel %vm39, %v19, 0
    %v56 = vsel %vm39, %v20, 0
    %v59 = vsel %vm39, %v21, 0
    %v62 = vsel %vm39, %v22, 0
    %v65 = vsel %vm39, %v23, 0
    %v68 = vsel %vm39, %v24, 0
    %v71 = vsel %vm39, %v25, 0
    %v74 = vsel %vm39, %v26, 0
    %v77 = vsel %vm39, %v27, 0
    %v80 = vsel %vm39, %v28, 0
    %v83 = vsel %vm39, %v29, 0
    %v86 = vsel %vm39, %v30, 0
    %v89 = vsel %vm39, %v31, 0
    %91 = vmatprep.subr.mxu0 0.0
    %92 = vmatpush1.xpose.msra.mxu0 %v89
    %93 = vmatprep.subr.mxu0 0.0
    %94 = vmatpush1.xpose.msra.mxu0 %v86
    %95 = vmatprep.subr.mxu0 0.0
    %96 = vmatpush1.xpose.msra.mxu0 %v83
    %97 = vmatprep.subr.mxu0 0.0
    %98 = vmatpush1.xpose.msra.mxu0 %v80
    %99 = vmatprep.subr.mxu0 0.0
    %100 = vmatpush1.xpose.msra.mxu0 %v77
    %101 = vmatprep.subr.mxu0 0.0
    %102 = vmatpush1.xpose.msra.mxu0 %v74
    %103 = vmatprep.subr.mxu0 0.0
    %104 = vmatpush1.xpose.msra.mxu0 %v71
    %105 = vmatprep.subr.mxu0 0.0
    %106 = vmatpush1.xpose.msra.mxu0 %v68
    %107 = vmatprep.subr.mxu0 0.0
    %108 = vmatpush1.xpose.msra.mxu0 %v65
    %109 = vmatprep.subr.mxu0 0.0
    %110 = vmatpush1.xpose.msra.mxu0 %v62
    %111 = vmatprep.subr.mxu0 0.0
    %112 = vmatpush1.xpose.msra.mxu0 %v59
    %113 = vmatprep.subr.mxu0 0.0
    %114 = vmatpush1.xpose.msra.mxu0 %v56
    %115 = vmatprep.subr.mxu0 0.0
    %116 = vmatpush1.xpose.msra.mxu0 %v53
    %117 = vmatprep.subr.mxu0 0.0
    %118 = vmatpush1.xpose.msra.mxu0 %v50
    %119 = vmatprep.subr.mxu0 0.0
    %120 = vmatpush1.xpose.msra.mxu0 %v47
    %121 = vmatprep.subr.mxu0 0.0
    %122 = vmatpush1.xpose.msra.mxu0 %v44
    %123 = vmatprep.subr.mxu0 0.0
    %124 = vmatpush2.xpose.msra.mxu0 0.0
    %125 = vmatprep.subr.mxu0 0.0
    %126 = vmatpush2.xpose.msra.mxu0 0.0
    %127 = vmatprep.subr.mxu0 0.0
    %128 = vmatpush2.xpose.msra.mxu0 0.0
    %129 = vmatprep.subr.mxu0 0.0
    %130 = vmatpush2.xpose.msra.mxu0 0.0
    %131 = vmatprep.subr.mxu0 0.0
    %132 = vmatpush2.xpose.msra.mxu0 0.0
    %133 = vmatprep.subr.mxu0 0.0
    %134 = vmatpush2.xpose.msra.mxu0 0.0
    %135 = vmatprep.subr.mxu0 0.0
    %136 = vmatpush2.xpose.msra.mxu0 0.0
    %137 = vmatprep.subr.mxu0 0.0
    %138 = vmatpush2.xpose.msra.mxu0 0.0
    %139 = vmatprep.subr.mxu0 0.0
    %140 = vmatpush2.xpose.msra.mxu0 0.0
    %141 = vmatprep.subr.mxu0 0.0
    %142 = vmatpush2.xpose.msra.mxu0 0.0
    %143 = vmatprep.subr.mxu0 0.0
    %144 = vmatpush2.xpose.msra.mxu0 0.0
    %145 = vmatprep.subr.mxu0 0.0
    %146 = vmatpush2.xpose.msra.mxu0 0.0
    %147 = vmatprep.subr.mxu0 0.0
    %148 = vmatpush2.xpose.msra.mxu0 0.0
    %149 = vmatprep.subr.mxu0 0.0
    %150 = vmatpush2.xpose.msra.mxu0 0.0
    %151 = vmatprep.subr.mxu0 0.0
    %152 = vmatpush2.xpose.msra.mxu0 0.0
    %153 = vmatprep.subr.mxu0 0.0
    %154 = vmatpush2.xpose.msra.mxu0 0.0
    %155 = vmatprep.mubr.f32.mxu0 0.0
    %156 = vmatmul.mubr.f32.gmra.mxu0 %v41
    %v157 = vpop.f32.mrf.mxu0
    %v158 = vadd.f32 %v37, %v157
    %v159 = vpop.f32.mrf.mxu0
    %160 = vdwg.mxu0
    %161 = vmax.xlane.f32.xlu0 %v158
    %v162 = vpop.xlane.xlu0 %161
    %v163 = vsub.f32 %v158, %v162
    %v164 = vmul.f32 %v163, 1.442695
    %v165 = vpow.pop %v164
    %166 = vadd.xlane.f32.xlu0 %v165
    %v167 = vpop.xlane.xlu0 %166
    %v168 = vrcp.pop %v167
    %v169 = vmul.f32 %v167, %v168
    %v170 = vsub.f32 2.0, %v169
    %v171 = vmul.f32 %v168, %v170
    %v172 = vmul.f32 %v165, %v171
    %173 = vst [vmem:[#allocation2] sm:$0xff] %v172
    // Predicated region
    $region14: #{logreg_forward.1} parent=1 // pred_check
      _
    $region15: #{logreg_forward.1} parent=1 // pred_check_branch
      %175 = sbr.rel (0) target = $region17
    $region16: #{logreg_forward.1} parent=1 // pred_region
      %s177 = ssub.s32 128, 128
      %178 = vsyncadd [#allocation3], %s177
      %s180 = sshll.u32 [#allocation2], 4
      %s181 = int_to_ptr.vmem [resolvable:$true] %s180
      %183 = dma.vmem_to_hbm [thread:$0]  %s181, 128, %s3, [#allocation3]
    $region17: #{logreg_forward.1} parent=1 // pred_fallthru
      _
    // Predicated region
    $region18: #{logreg_forward.1} parent=1 // pred_check
      _
    $region19: #{logreg_forward.1} parent=1 // pred_check_branch
      %185 = sbr.rel (0) target = $region21
    $region20: #{logreg_forward.1} parent=1 // pred_region
      %186 = dma.done [#allocation3], 128
    $region21: #{logreg_forward.1} parent=1 // pred_fallthru
      _
    %187 = vsyncpa [#allocation3], 1

</llo_original>
